<compile_context>
chip_gen: v6e
topology: v6e:2x2x1
jax: 0.10.0
libtpu: 0.0.40
codegen_flags: <defaults>
</compile_context>

<pallas_src>
import math

import jax
import jax.numpy as jnp
from jax.experimental import pallas as pl
from jax.experimental.pallas import tpu as pltpu

LN_EPS = 1e-5
_INV_SQRT2 = 1.0 / math.sqrt(2.0)


def _ffn_kernel(x_ref, gamma_ref, beta_ref, w1_ref, b1_ref, w2_ref, b2_ref,
                o_ref, xn_ref, acc_ref):
    """One (row-tile, hidden-tile) grid step.

    Grid = (num_row_tiles, num_hidden_tiles).  The hidden axis is the inner
    reduction ("arbitrary") axis; acc_ref is the resident f32 accumulator.
    """
    k = pl.program_id(1)
    nk = pl.num_programs(1)

    # ---- LayerNorm once per row tile (k == 0); normalized rows cached in a
    # bf16 scratch and reused for every hidden tile of this row tile. ----
    @pl.when(k == 0)
    def _():
        x = x_ref[...].astype(jnp.float32)
        gamma = gamma_ref[...].astype(jnp.float32)   # (1, dim)
        beta = beta_ref[...].astype(jnp.float32)     # (1, dim)
        # One-pass stats: var = E[x^2] - mean^2 (both reductions issue
        # back-to-back on the XLU; no reduce->subtract->reduce chain).
        mean = jnp.mean(x, axis=-1, keepdims=True)
        msq = jnp.mean(x * x, axis=-1, keepdims=True)
        var = jnp.maximum(msq - mean * mean, 0.0)
        scale = jax.lax.rsqrt(var + LN_EPS) * gamma  # gamma folded into scale
        xn_ref[...] = ((x - mean) * scale + beta).astype(jnp.bfloat16)
        acc_ref[...] = jnp.zeros_like(acc_ref)

    # ---- Linear(dim -> tile_h): bf16 operands, f32 accumulation on the MXU ----
    h = jnp.dot(xn_ref[...], w1_ref[...], preferred_element_type=jnp.float32)
    h = h + b1_ref[...].astype(jnp.float32)          # (tile_rows, tile_h)

    # ---- GELU (exact, erf-based; matches torch.nn.GELU default) ----
    h = 0.5 * h * (1.0 + jax.lax.erf(h * _INV_SQRT2))

    # ---- Dropout(p=0.0) is identity in the forward pass ----
    # TODO(synk): dropout with p>0 would need pltpu.prng_random_bits; p=0.0 here.

    # ---- Linear(tile_h -> dim) partial product, accumulated in f32 ----
    acc_ref[...] += jnp.dot(h.astype(jnp.bfloat16), w2_ref[...],
                            preferred_element_type=jnp.float32)

    # ---- Finalize this row tile: add output bias, cast, store ----
    @pl.when(k == nk - 1)
    def _():
        out = acc_ref[...] + b2_ref[...].astype(jnp.float32)
        o_ref[...] = out.astype(o_ref.dtype)


def _round_up(v, m):
    return -(-v // m) * m


def _pick_tile(total, target, align):
    """Largest multiple of `align` <= target that divides `total`
    (assumes total % align == 0); returns `total` if target >= total."""
    if target >= total:
        return total
    t = max(align, (min(target, total) // align) * align)
    while t > align and total % t != 0:
        t -= align
    return t if total % t == 0 else total


def _vmem_limit_bytes():
    # ~75% of physical VMEM per TensorCore: ~96 MiB on v5e/v6e, ~48 MiB on v7x.
    try:
        return int(pltpu.get_tpu_info().vmem_capacity_bytes * 0.75)
    except Exception:
        return 48 * 1024 * 1024


def feedforward_pallas(x, gamma, beta, w1, b1, w2, b2, *,
                       tile_rows=256, tile_hidden=512):
    """x: (B, N, dim).  w1: (dim, hidden), w2: (hidden, dim) (already transposed
    relative to PyTorch's (out_features, in_features) layout)."""
    B, N, dim = x.shape
    hidden = w1.shape[1]
    rows = B * N

    # ---- Row (M) tiling: multiple of 8; clamp so the "parallel" row axis has
    # at least 2 iterations (shards across v7x's 2 TensorCores); pick a tile
    # that divides the (8-rounded) row count so no full-tensor pad is needed
    # whenever rows is already 8-aligned.
    rows_pad8 = _round_up(rows, 8)
    target_rows = min(int(tile_rows), max(8, rows_pad8 // 2))
    tile_rows = _pick_tile(rows_pad8, target_rows, 8)
    num_row_tiles = rows_pad8 // tile_rows

    # ---- Hidden (reduction) tiling: MXU-friendly multiples of 256 (or 128) so
    # W1/W2 never need to be fully VMEM-resident at real transformer dims.
    if hidden % 256 == 0:
        tile_h = _pick_tile(hidden, int(tile_hidden), 256)
    elif hidden % 128 == 0:
        tile_h = _pick_tile(hidden, int(tile_hidden), 128)
    else:
        tile_h = hidden
    num_h_tiles = hidden // tile_h

    x2 = x.reshape(rows, dim)
    if rows_pad8 != rows:
        # Only when rows isn't 8-aligned (<= 7 pad rows).  LN of a zero row is
        # finite (var + eps); padded output rows are sliced away below.
        x2 = jnp.pad(x2, ((0, rows_pad8 - rows), (0, 0)))

    gamma2 = gamma.reshape(1, dim).astype(jnp.float32)
    beta2 = beta.reshape(1, dim).astype(jnp.float32)
    b1_2 = b1.reshape(1, hidden).astype(jnp.float32)
    b2_2 = b2.reshape(1, dim).astype(jnp.float32)

    # bf16 weights (MXU-native, halves weight VMEM/HBM traffic).  Pre-cast by
    # the caller (or jit this wrapper) so this is a no-op per call.
    w1_bf = w1 if w1.dtype == jnp.bfloat16 else w1.astype(jnp.bfloat16)
    w2_bf = w2 if w2.dtype == jnp.bfloat16 else w2.astype(jnp.bfloat16)

    const = dict(pipeline_mode=pl.Buffered(1))  # single-buffer constant blocks

    out2 = pl.pallas_call(
        _ffn_kernel,
        out_shape=jax.ShapeDtypeStruct((rows_pad8, dim), x.dtype),
        grid_spec=pltpu.PrefetchScalarGridSpec(
            num_scalar_prefetch=0,
            grid=(num_row_tiles, num_h_tiles),
            in_specs=[
                pl.BlockSpec((tile_rows, dim), lambda i, k: (i, 0)),      # x rows
                pl.BlockSpec((1, dim), lambda i, k: (0, 0), **const),     # gamma
                pl.BlockSpec((1, dim), lambda i, k: (0, 0), **const),     # beta
                pl.BlockSpec((dim, tile_h), lambda i, k: (0, k)),         # W1 tile
                pl.BlockSpec((1, tile_h), lambda i, k: (0, k)),           # b1 tile
                pl.BlockSpec((tile_h, dim), lambda i, k: (k, 0)),         # W2 tile
                pl.BlockSpec((1, dim), lambda i, k: (0, 0), **const),     # b2
            ],
            out_specs=pl.BlockSpec((tile_rows, dim), lambda i, k: (i, 0)),
            scratch_shapes=[
                pltpu.VMEM((tile_rows, dim), jnp.bfloat16),   # cached LayerNorm(x)
                pltpu.VMEM((tile_rows, dim), jnp.float32),    # f32 accumulator
            ],
        ),
        compiler_params=pltpu.CompilerParams(
            dimension_semantics=("parallel", "arbitrary"),
            vmem_limit_bytes=_vmem_limit_bytes(),
        ),
    )(x2, gamma2, beta2, w1_bf, b1_2, w2_bf, b2_2)

    if rows_pad8 != rows:
        out2 = out2[:rows]
    return out2.reshape(B, N, dim)


def _reference(x, gamma, beta, w1, b1, w2, b2):
    # Pure f32 reference matching the PyTorch module's forward.
    xf = x.astype(jnp.float32)
    mean = jnp.mean(xf, axis=-1, keepdims=True)
    var = jnp.mean((xf - mean) ** 2, axis=-1, keepdims=True)
    xn = (xf - mean) / jnp.sqrt(var + LN_EPS) * gamma + beta
    h = xn @ w1 + b1
    h = 0.5 * h * (1.0 + jax.lax.erf(h / math.sqrt(2.0)))
    out = h @ w2 + b2
    return out.astype(x.dtype)


if __name__ == "__main__":
    # Small but lane-dense shapes (dim/hidden multiples of 128).
    B, N, dim, hidden = 2, 8, 128, 256

    key = jax.random.PRNGKey(0)
    kx, kg, kb, kw1, kb1, kw2, kb2 = jax.random.split(key, 7)

    x = jax.random.normal(kx, (B, N, dim), dtype=jnp.float32)

    # LayerNorm params (perturbed from the PyTorch init to exercise the folding).
    gamma = 1.0 + 0.1 * jax.random.normal(kg, (dim,), dtype=jnp.float32)
    beta = 0.1 * jax.random.normal(kb, (dim,), dtype=jnp.float32)

    # Linear params stored as (in_features, out_features) for row-major matmul.
    bound1 = 1.0 / math.sqrt(dim)
    w1 = jax.random.uniform(kw1, (dim, hidden), minval=-bound1, maxval=bound1,
                            dtype=jnp.float32)
    b1 = jax.random.uniform(kb1, (hidden,), minval=-bound1, maxval=bound1,
                            dtype=jnp.float32)
    bound2 = 1.0 / math.sqrt(hidden)
    w2 = jax.random.uniform(kw2, (hidden, dim), minval=-bound2, maxval=bound2,
                            dtype=jnp.float32)
    b2 = jax.random.uniform(kb2, (dim,), minval=-bound2, maxval=bound2,
                            dtype=jnp.float32)

    # Pre-cast weights to bf16 once (no per-call HBM cast pass), jit the wrapper.
    w1_bf = w1.astype(jnp.bfloat16)
    w2_bf = w2.astype(jnp.bfloat16)
    ffn = jax.jit(feedforward_pallas)

    out = ffn(x, gamma, beta, w1_bf, b1, w2_bf, b2)
    out = jax.block_until_ready(out)

    ref = _reference(x, gamma, beta, w1, b1, w2, b2)
    assert out.shape == (B, N, dim)
    # bf16 matmul operands with f32 accumulation -> loosened tolerance vs f32 ref.
    assert jnp.allclose(out, ref, atol=3e-2, rtol=3e-2), "mismatch vs reference"

    print("KERNEL_OK")
</pallas_src>

<mosaic_0001>
module attributes {stable_mosaic.version = 11 : i64} {
  func.func @_ffn_kernel(%arg0: i32, %arg1: i32, %arg2: memref<8x128xf32, #tpu.memory_space<vmem>>, %arg3: memref<1x128xf32, #tpu.memory_space<vmem>>, %arg4: memref<1x128xf32, #tpu.memory_space<vmem>>, %arg5: memref<128x256xbf16, #tpu.memory_space<vmem>>, %arg6: memref<1x256xf32, #tpu.memory_space<vmem>>, %arg7: memref<256x128xbf16, #tpu.memory_space<vmem>>, %arg8: memref<1x128xf32, #tpu.memory_space<vmem>>, %arg9: memref<8x128xf32, #tpu.memory_space<vmem>>, %arg10: memref<8x128xbf16, #tpu.memory_space<vmem>>, %arg11: memref<8x128xf32, #tpu.memory_space<vmem>>) attributes {dimension_semantics = [#tpu.dimension_semantics<parallel>, #tpu.dimension_semantics<arbitrary>], iteration_bounds = array<i64: 2, 1>, scalar_prefetch = 0 : i64, scratch_operands = 2 : i64, tpu.core_type = #tpu.core_type<tc>, window_params = [{transform_indices = @transform_0, window_bounds = array<i64: 8, 128>}, {pipeline_mode = #tpu.pipeline_mode<synchronous>, transform_indices = @transform_1, window_bounds = array<i64: 1, 128>}, {pipeline_mode = #tpu.pipeline_mode<synchronous>, transform_indices = @transform_2, window_bounds = array<i64: 1, 128>}, {transform_indices = @transform_3, window_bounds = array<i64: 128, 256>}, {transform_indices = @transform_4, window_bounds = array<i64: 1, 256>}, {transform_indices = @transform_5, window_bounds = array<i64: 256, 128>}, {pipeline_mode = #tpu.pipeline_mode<synchronous>, transform_indices = @transform_6, window_bounds = array<i64: 1, 128>}, {transform_indices = @transform_7, window_bounds = array<i64: 8, 128>}]} {
    %c0_i32 = arith.constant 0 : i32
    %0 = arith.cmpi eq, %arg1, %c0_i32 : i32
    %1 = arith.extui %0 : i1 to i32
    %c0_i32_0 = arith.constant 0 : i32
    %2 = arith.cmpi ne, %1, %c0_i32_0 : i32
    scf.if %2 {
      %c0_18 = arith.constant 0 : index
      %c0_19 = arith.constant 0 : index
      %26 = vector.load %arg2[%c0_18, %c0_19] : memref<8x128xf32, #tpu.memory_space<vmem>>, vector<8x128xf32>
      %c0_20 = arith.constant 0 : index
      %c0_21 = arith.constant 0 : index
      %27 = vector.load %arg3[%c0_20, %c0_21] : memref<1x128xf32, #tpu.memory_space<vmem>>, vector<1x128xf32>
      %c0_22 = arith.constant 0 : index
      %c0_23 = arith.constant 0 : index
      %28 = vector.load %arg4[%c0_22, %c0_23] : memref<1x128xf32, #tpu.memory_space<vmem>>, vector<1x128xf32>
      %cst_24 = arith.constant dense<0.000000e+00> : vector<8xf32>
      %29 = vector.multi_reduction <add>, %26, %cst_24 [1] : vector<8x128xf32> to vector<8xf32>
      %30 = vector.shape_cast %29 : vector<8xf32> to vector<8x1xf32>
      %cst_25 = arith.constant 1.280000e+02 : f32
      %31 = vector.broadcast %cst_25 : f32 to vector<8x1xf32>
      %32 = arith.divf %30, %31 : vector<8x1xf32>
      %33 = arith.mulf %26, %26 : vector<8x128xf32>
      %cst_26 = arith.constant dense<0.000000e+00> : vector<8xf32>
      %34 = vector.multi_reduction <add>, %33, %cst_26 [1] : vector<8x128xf32> to vector<8xf32>
      %35 = vector.shape_cast %34 : vector<8xf32> to vector<8x1xf32>
      %cst_27 = arith.constant 1.280000e+02 : f32
      %36 = vector.broadcast %cst_27 : f32 to vector<8x1xf32>
      %37 = arith.divf %35, %36 : vector<8x1xf32>
      %38 = arith.mulf %32, %32 : vector<8x1xf32>
      %39 = arith.subf %37, %38 : vector<8x1xf32>
      %cst_28 = arith.constant 0.000000e+00 : f32
      %40 = vector.broadcast %cst_28 : f32 to vector<8x1xf32>
      %41 = arith.maximumf %39, %40 : vector<8x1xf32>
      %cst_29 = arith.constant 9.99999974E-6 : f32
      %42 = vector.broadcast %cst_29 : f32 to vector<8x1xf32>
      %43 = arith.addf %41, %42 : vector<8x1xf32>
      %44 = math.rsqrt %43 : vector<8x1xf32>
      %45 = vector.broadcast %44 : vector<8x1xf32> to vector<8x128xf32>
      %46 = vector.broadcast %27 : vector<1x128xf32> to vector<8x128xf32>
      %47 = arith.mulf %45, %46 : vector<8x128xf32>
      %48 = vector.broadcast %32 : vector<8x1xf32> to vector<8x128xf32>
      %49 = arith.subf %26, %48 : vector<8x128xf32>
      %50 = arith.mulf %49, %47 : vector<8x128xf32>
      %51 = vector.broadcast %28 : vector<1x128xf32> to vector<8x128xf32>
      %52 = arith.addf %50, %51 : vector<8x128xf32>
      %53 = arith.truncf %52 : vector<8x128xf32> to vector<8x128xbf16>
      %c0_30 = arith.constant 0 : index
      %c0_31 = arith.constant 0 : index
      %54 = vector.load %arg10[%c0_30, %c0_31] : memref<8x128xbf16, #tpu.memory_space<vmem>>, vector<8x128xbf16>
      tpu.vector_store %arg10[%c0_30, %c0_31], %53 {strides = array<i32>} : memref<8x128xbf16, #tpu.memory_space<vmem>>, vector<8x128xbf16>,
      %cst_32 = arith.constant 0.000000e+00 : f32
      %55 = vector.broadcast %cst_32 : f32 to vector<8x128xf32>
      %c0_33 = arith.constant 0 : index
      %c0_34 = arith.constant 0 : index
      %56 = vector.load %arg11[%c0_33, %c0_34] : memref<8x128xf32, #tpu.memory_space<vmem>>, vector<8x128xf32>
      tpu.vector_store %arg11[%c0_33, %c0_34], %55 {strides = array<i32>} : memref<8x128xf32, #tpu.memory_space<vmem>>, vector<8x128xf32>,
    } else {
    }
    %c0 = arith.constant 0 : index
    %c0_1 = arith.constant 0 : index
    %3 = vector.load %arg10[%c0, %c0_1] : memref<8x128xbf16, #tpu.memory_space<vmem>>, vector<8x128xbf16>
    %c0_2 = arith.constant 0 : index
    %c0_3 = arith.constant 0 : index
    %4 = vector.load %arg5[%c0_2, %c0_3] : memref<128x256xbf16, #tpu.memory_space<vmem>>, vector<128x256xbf16>
    %cst = arith.constant dense<0.000000e+00> : vector<8x256xf32>
    %5 = tpu.matmul %3, %4, %cst {dimension_numbers = #tpu.dot_dimension_numbers<[1], [0], [0], [1], [0, 0, 1, 1], [], []>} : vector<8x128xbf16>, vector<128x256xbf16>, vector<8x256xf32> -> vector<8x256xf32>
    %c0_4 = arith.constant 0 : index
    %c0_5 = arith.constant 0 : index
    %6 = vector.load %arg6[%c0_4, %c0_5] : memref<1x256xf32, #tpu.memory_space<vmem>>, vector<1x256xf32>
    %7 = vector.broadcast %6 : vector<1x256xf32> to vector<8x256xf32>
    %8 = arith.addf %5, %7 : vector<8x256xf32>
    %cst_6 = arith.constant 5.000000e-01 : f32
    %9 = vector.broadcast %cst_6 : f32 to vector<8x256xf32>
    %10 = arith.mulf %9, %8 : vector<8x256xf32>
    %cst_7 = arith.constant 0.707106769 : f32
    %11 = vector.broadcast %cst_7 : f32 to vector<8x256xf32>
    %12 = arith.mulf %8, %11 : vector<8x256xf32>
    %13 = math.erf %12 : vector<8x256xf32>
    %cst_8 = arith.constant 1.000000e+00 : f32
    %14 = vector.broadcast %cst_8 : f32 to vector<8x256xf32>
    %15 = arith.addf %14, %13 : vector<8x256xf32>
    %16 = arith.mulf %10, %15 : vector<8x256xf32>
    %c0_9 = arith.constant 0 : index
    %c0_10 = arith.constant 0 : index
    %17 = vector.load %arg11[%c0_9, %c0_10] : memref<8x128xf32, #tpu.memory_space<vmem>>, vector<8x128xf32>
    %18 = arith.truncf %16 : vector<8x256xf32> to vector<8x256xbf16>
    %c0_11 = arith.constant 0 : index
    %c0_12 = arith.constant 0 : index
    %19 = vector.load %arg7[%c0_11, %c0_12] : memref<256x128xbf16, #tpu.memory_space<vmem>>, vector<256x128xbf16>
    %cst_13 = arith.constant dense<0.000000e+00> : vector<8x128xf32>
    %20 = tpu.matmul %18, %19, %cst_13 {dimension_numbers = #tpu.dot_dimension_numbers<[1], [0], [0], [1], [0, 0, 1, 1], [], []>} : vector<8x256xbf16>, vector<256x128xbf16>, vector<8x128xf32> -> vector<8x128xf32>
    %21 = arith.addf %17, %20 : vector<8x128xf32>
    %c0_14 = arith.constant 0 : index
    %c0_15 = arith.constant 0 : index
    %22 = vector.load %arg11[%c0_14, %c0_15] : memref<8x128xf32, #tpu.memory_space<vmem>>, vector<8x128xf32>
    tpu.vector_store %arg11[%c0_14, %c0_15], %21 {strides = array<i32>} : memref<8x128xf32, #tpu.memory_space<vmem>>, vector<8x128xf32>,
    %c0_i32_16 = arith.constant 0 : i32
    %23 = arith.cmpi eq, %arg1, %c0_i32_16 : i32
    %24 = arith.extui %23 : i1 to i32
    %c0_i32_17 = arith.constant 0 : i32
    %25 = arith.cmpi ne, %24, %c0_i32_17 : i32
    scf.if %25 {
      %c0_18 = arith.constant 0 : index
      %c0_19 = arith.constant 0 : index
      %26 = vector.load %arg11[%c0_18, %c0_19] : memref<8x128xf32, #tpu.memory_space<vmem>>, vector<8x128xf32>
      %c0_20 = arith.constant 0 : index
      %c0_21 = arith.constant 0 : index
      %27 = vector.load %arg8[%c0_20, %c0_21] : memref<1x128xf32, #tpu.memory_space<vmem>>, vector<1x128xf32>
      %28 = vector.broadcast %27 : vector<1x128xf32> to vector<8x128xf32>
      %29 = arith.addf %26, %28 : vector<8x128xf32>
      %c0_22 = arith.constant 0 : index
      %c0_23 = arith.constant 0 : index
      %30 = vector.load %arg9[%c0_22, %c0_23] : memref<8x128xf32, #tpu.memory_space<vmem>>, vector<8x128xf32>
      tpu.vector_store %arg9[%c0_22, %c0_23], %29 {strides = array<i32>} : memref<8x128xf32, #tpu.memory_space<vmem>>, vector<8x128xf32>,
    } else {
    }
    return
  }
  func.func @transform_0(%arg0: i32, %arg1: i32) -> (i32, i32) {
    %c0_i32 = arith.constant 0 : i32
    %c0_i32_0 = arith.constant 0 : i32
    return %arg0, %c0_i32 : i32, i32
  }
  func.func @transform_1(%arg0: i32, %arg1: i32) -> (i32, i32) {
    %c0_i32 = arith.constant 0 : i32
    %c0_i32_0 = arith.constant 0 : i32
    %c0_i32_1 = arith.constant 0 : i32
    return %c0_i32, %c0_i32_0 : i32, i32
  }
  func.func @transform_2(%arg0: i32, %arg1: i32) -> (i32, i32) {
    %c0_i32 = arith.constant 0 : i32
    %c0_i32_0 = arith.constant 0 : i32
    %c0_i32_1 = arith.constant 0 : i32
    return %c0_i32, %c0_i32_0 : i32, i32
  }
  func.func @transform_3(%arg0: i32, %arg1: i32) -> (i32, i32) {
    %c0_i32 = arith.constant 0 : i32
    %c0_i32_0 = arith.constant 0 : i32
    return %c0_i32, %arg1 : i32, i32
  }
  func.func @transform_4(%arg0: i32, %arg1: i32) -> (i32, i32) {
    %c0_i32 = arith.constant 0 : i32
    %c0_i32_0 = arith.constant 0 : i32
    return %c0_i32, %arg1 : i32, i32
  }
  func.func @transform_5(%arg0: i32, %arg1: i32) -> (i32, i32) {
    %c0_i32 = arith.constant 0 : i32
    %c0_i32_0 = arith.constant 0 : i32
    return %arg1, %c0_i32 : i32, i32
  }
  func.func @transform_6(%arg0: i32, %arg1: i32) -> (i32, i32) {
    %c0_i32 = arith.constant 0 : i32
    %c0_i32_0 = arith.constant 0 : i32
    %c0_i32_1 = arith.constant 0 : i32
    return %c0_i32, %c0_i32_0 : i32, i32
  }
  func.func @transform_7(%arg0: i32, %arg1: i32) -> (i32, i32) {
    %c0_i32 = arith.constant 0 : i32
    %c0_i32_0 = arith.constant 0 : i32
    return %arg0, %c0_i32 : i32, i32
  }
}

</mosaic_0001>

<llo_original>
// kernel: feedforward_pallas.1
$region0: #{feedforward_pallas.1}
  #allocation0 [shape = 'u32[]', space=smem, size = 0x4, offset = 0x4, fixed_abs, tag = 'smem constant byte address 0x4 - core index']
  #allocation1 [shape = 'u32[144,128]{1,0:T(1,128)}', space=vmem, size = 0x12000, scoped, tag = 'internal scratch']
  #allocation2 [shape = 'bf16[8,128]{1,0:T(8,128)(2,1)}', space=vmem, size = 0x800, scoped, tag = 'scratch operand']
  #allocation3 [shape = 'f32[8,128]{1,0:T(8,128)}', space=vmem, size = 0x1000, scoped, tag = 'scratch operand']
  %s0 = inlined_call_operand.hbm [shape: f32[16,128], index: 0, kind: input, shape index: {}]
  %s1 = inlined_call_operand.vmem [shape: f32[1,128], index: 1, kind: input, shape index: {}]
  %s2 = inlined_call_operand.vmem [shape: f32[1,128], index: 2, kind: input, shape index: {}]
  %s3 = inlined_call_operand.hbm [shape: bf16[128,256], index: 3, kind: input, shape index: {}]
  %s4 = inlined_call_operand.vmem [shape: f32[1,256], index: 4, kind: input, shape index: {}]
  %s5 = inlined_call_operand.hbm [shape: bf16[256,128], index: 5, kind: input, shape index: {}]
  %s6 = inlined_call_operand.vmem [shape: f32[1,128], index: 6, kind: input, shape index: {}]
  %s7 = inlined_call_operand.hbm [shape: f32[16,128], index: 7, kind: output, shape index: {}]
  %s8 = sld [smem:[#allocation0]]
  $region81: #{feedforward_pallas.1} parent=0
    _
  %s10 = ssub.s32 1, %s8
  %s11 = scalar_select 0, %s10, %s8
  $region1: #{feedforward_pallas.1} parent=0
    #allocation4 [shape = 'u8[8192]{0}', space=vmem, size = 0x2000, scoped, tag = 'input window, operand 0']
    #allocation5 [shape = 's32[2]{0}', space=sflag, size = 0x8, scoped, tag = 'scoped memory for feedforward_pallas.1']
    #allocation6 [shape = 's32[2]{0}', space=sflag, size = 0x8, scoped, tag = 'scoped memory for feedforward_pallas.1']
    #allocation7 [shape = 'u8[65536]{0}', space=vmem, size = 0x10000, scoped, tag = 'input window, operand 3, single buffered']
    #allocation8 [shape = 's32[1]{0}', space=sflag, size = 0x4, scoped, tag = 'scoped memory for feedforward_pallas.1']
    #allocation9 [shape = 'u8[65536]{0}', space=vmem, size = 0x10000, scoped, tag = 'input window, operand 5, single buffered']
    #allocation10 [shape = 'u8[8192]{0}', space=vmem, size = 0x2000, scoped, tag = 'output window, operand 0']
    %12 = vsyncpa [#allocation5], 0
    %s13 = scalar_lea.sflag [#allocation5], 1
    %14 = vsyncpa %s13, 0
    %15 = vsyncpa [#allocation8], 0
    %16 = vsyncpa [#allocation6], 0
    %s17 = scalar_lea.sflag [#allocation6], 1
    %18 = vsyncpa %s17, 0
    loop: start=0, step=1, limit=4
    $region2: #{feedforward_pallas.1} parent=1 // loop_pre_header
      _
    $region3: #{feedforward_pallas.1} parent=1 // loop_header
      %s20 = sphi 0, %s24
      %p21 = scmp.ge.s32.totalorder %s20, 4
      %s27 = sphi 0, %s39
      %s28 = sphi 0, %s35
      %s29 = sphi 0, %s27
      %s30 = sphi 0, %s28
      %s31 = sphi 0, %s29
      %s32 = sphi 0, %s30
      %s42 = sphi 0, %s44
      %s45 = sphi 0, %s42
      %s46 = sphi 0, %s45
      %s62 = sphi 0, %s46
      %s66 = sphi 0, %s66
      %s68 = sphi 0, %s66
      %s69 = sphi 0, %s68
      %s83 = sphi 0, %s69
      %s87 = sphi 0, %s87
      %s89 = sphi 0, %s87
      %s90 = sphi 0, %s89
      %s104 = sphi 0, %s90
      %s110 = sphi 0, %s112
      %s113 = sphi 0, %s110
      %s114 = sphi 0, %s113
      %s130 = sphi 0, %s114
      %s136 = sphi 0, %s138
      %s139 = sphi 0, %s136
      %s140 = sphi 0, %s139
      %s156 = sphi 0, %s140
      %s162 = sphi 0, %s164
      %s165 = sphi 0, %s162
      %s166 = sphi 0, %s165
      %s182 = sphi 0, %s166
      %s186 = sphi 0, %s186
      %s188 = sphi 0, %s186
      %s189 = sphi 0, %s188
      %s203 = sphi 0, %s189
      %s209 = sphi 0, %s211
      %s212 = sphi 0, %s209
      %s213 = sphi 0, %s212
      %s229 = sphi 0, %s213
    $region4: #{feedforward_pallas.1} parent=1 // loop_header_branch
      %23 = sbr.rel (%p21) target = $region8
    $region5: #{feedforward_pallas.1} parent=1 // loop_body
      %s25 = ssub.s32 %s20, 1
      %s26 = ssub.s32 %s20, 2
      %s33 = sadd.s32 1, %s28
      %p34 = scmp.ge.s32.totalorder %s33, 1
      %s35 = scalar_select %p34, 0, %s33
      %s36 = sadd.s32 1, %s27
      %s37 = scalar_select %p34, %s36, %s27
      %p38 = scmp.ge.s32.totalorder %s37, 2
      %s39 = scalar_select %p38, 0, %s37
      %s40 = ssub.s32 %s27, %s39
      %p41 = scmp.eq.s32.totalorder %s40, 0
      %s43 = sadd.s32 %s42, 1
      %s44 = scalar_select %p41, %s42, %s43
      %p47 = pneg %p41
      %p48 = scmp.eq.s32.totalorder %s20, 1
      %p49 = por %p47, %p48
      %p50 = scmp.ne.s32.totalorder %s42, %s45
      %p51 = scmp.eq.s32.totalorder %s20, 0
      %p52 = por %p50, %p51
      %p53 = scmp.ne.s32.totalorder %s42, %s45
      %p54 = scmp.eq.s32.totalorder %s25, 1
      %p55 = por %p53, %p54
      %p56 = scmp.ne.s32.totalorder %s45, %s46
      %p57 = scmp.eq.s32.totalorder %s25, 0
      %p58 = por %p56, %p57
      %p59 = scmp.ne.s32.totalorder %s45, %s46
      %p60 = scmp.eq.s32.totalorder %s26, 1
      %p61 = por %p59, %p60
      %p63 = scmp.ne.s32.totalorder %s46, %s62
      %p64 = scmp.eq.s32.totalorder %s26, 0
      %p65 = por %p63, %p64
      %s67 = sadd.s32 %s66, 1
      %p70 = scmp.eq.s32.totalorder %s20, 1
      %p71 = scmp.ne.s32.totalorder %s66, %s68
      %p72 = scmp.eq.s32.totalorder %s20, 0
      %p73 = por %p71, %p72
      %p74 = scmp.ne.s32.totalorder %s66, %s68
      %p75 = scmp.eq.s32.totalorder %s25, 1
      %p76 = por %p74, %p75
      %p77 = scmp.ne.s32.totalorder %s68, %s69
      %p78 = scmp.eq.s32.totalorder %s25, 0
      %p79 = por %p77, %p78
      %p80 = scmp.ne.s32.totalorder %s68, %s69
      %p81 = scmp.eq.s32.totalorder %s26, 1
      %p82 = por %p80, %p81
      %p84 = scmp.ne.s32.totalorder %s69, %s83
      %p85 = scmp.eq.s32.totalorder %s26, 0
      %p86 = por %p84, %p85
      %s88 = sadd.s32 %s87, 1
      %p91 = scmp.eq.s32.totalorder %s20, 1
      %p92 = scmp.ne.s32.totalorder %s87, %s89
      %p93 = scmp.eq.s32.totalorder %s20, 0
      %p94 = por %p92, %p93
      %p95 = scmp.ne.s32.totalorder %s87, %s89
      %p96 = scmp.eq.s32.totalorder %s25, 1
      %p97 = por %p95, %p96
      %p98 = scmp.ne.s32.totalorder %s89, %s90
      %p99 = scmp.eq.s32.totalorder %s25, 0
      %p100 = por %p98, %p99
      %p101 = scmp.ne.s32.totalorder %s89, %s90
      %p102 = scmp.eq.s32.totalorder %s26, 1
      %p103 = por %p101, %p102
      %p105 = scmp.ne.s32.totalorder %s90, %s104
      %p106 = scmp.eq.s32.totalorder %s26, 0
      %p107 = por %p105, %p106
      %s108 = ssub.s32 %s28, %s35
      %p109 = scmp.eq.s32.totalorder %s108, 0
      %s111 = sadd.s32 %s110, 1
      %s112 = scalar_select %p109, %s110, %s111
      %p115 = pneg %p109
      %p116 = scmp.eq.s32.totalorder %s20, 1
      %p117 = por %p115, %p116
      %p118 = scmp.ne.s32.totalorder %s110, %s113
      %p119 = scmp.eq.s32.totalorder %s20, 0
      %p120 = por %p118, %p119
      %p121 = scmp.ne.s32.totalorder %s110, %s113
      %p122 = scmp.eq.s32.totalorder %s25, 1
      %p123 = por %p121, %p122
      %p124 = scmp.ne.s32.totalorder %s113, %s114
      %p125 = scmp.eq.s32.totalorder %s25, 0
      %p126 = por %p124, %p125
      %p127 = scmp.ne.s32.totalorder %s113, %s114
      %p128 = scmp.eq.s32.totalorder %s26, 1
      %p129 = por %p127, %p128
      %p131 = scmp.ne.s32.totalorder %s114, %s130
      %p132 = scmp.eq.s32.totalorder %s26, 0
      %p133 = por %p131, %p132
      %s134 = ssub.s32 %s28, %s35
      %p135 = scmp.eq.s32.totalorder %s134, 0
      %s137 = sadd.s32 %s136, 1
      %s138 = scalar_select %p135, %s136, %s137
      %p141 = pneg %p135
      %p142 = scmp.eq.s32.totalorder %s20, 1
      %p143 = por %p141, %p142
      %p144 = scmp.ne.s32.totalorder %s136, %s139
      %p145 = scmp.eq.s32.totalorder %s20, 0
      %p146 = por %p144, %p145
      %p147 = scmp.ne.s32.totalorder %s136, %s139
      %p148 = scmp.eq.s32.totalorder %s25, 1
      %p149 = por %p147, %p148
      %p150 = scmp.ne.s32.totalorder %s139, %s140
      %p151 = scmp.eq.s32.totalorder %s25, 0
      %p152 = por %p150, %p151
      %p153 = scmp.ne.s32.totalorder %s139, %s140
      %p154 = scmp.eq.s32.totalorder %s26, 1
      %p155 = por %p153, %p154
      %p157 = scmp.ne.s32.totalorder %s140, %s156
      %p158 = scmp.eq.s32.totalorder %s26, 0
      %p159 = por %p157, %p158
      %s160 = ssub.s32 %s28, %s35
      %p161 = scmp.eq.s32.totalorder %s160, 0
      %s163 = sadd.s32 %s162, 1
      %s164 = scalar_select %p161, %s162, %s163
      %p167 = pneg %p161
      %p168 = scmp.eq.s32.totalorder %s20, 1
      %p169 = por %p167, %p168
      %p170 = scmp.ne.s32.totalorder %s162, %s165
      %p171 = scmp.eq.s32.totalorder %s20, 0
      %p172 = por %p170, %p171
      %p173 = scmp.ne.s32.totalorder %s162, %s165
      %p174 = scmp.eq.s32.totalorder %s25, 1
      %p175 = por %p173, %p174
      %p176 = scmp.ne.s32.totalorder %s165, %s166
      %p177 = scmp.eq.s32.totalorder %s25, 0
      %p178 = por %p176, %p177
      %p179 = scmp.ne.s32.totalorder %s165, %s166
      %p180 = scmp.eq.s32.totalorder %s26, 1
      %p181 = por %p179, %p180
      %p183 = scmp.ne.s32.totalorder %s166, %s182
      %p184 = scmp.eq.s32.totalorder %s26, 0
      %p185 = por %p183, %p184
      %s187 = sadd.s32 %s186, 1
      %p190 = scmp.eq.s32.totalorder %s20, 1
      %p191 = scmp.ne.s32.totalorder %s186, %s188
      %p192 = scmp.eq.s32.totalorder %s20, 0
      %p193 = por %p191, %p192
      %p194 = scmp.ne.s32.totalorder %s186, %s188
      %p195 = scmp.eq.s32.totalorder %s25, 1
      %p196 = por %p194, %p195
      %p197 = scmp.ne.s32.totalorder %s188, %s189
      %p198 = scmp.eq.s32.totalorder %s25, 0
      %p199 = por %p197, %p198
      %p200 = scmp.ne.s32.totalorder %s188, %s189
      %p201 = scmp.eq.s32.totalorder %s26, 1
      %p202 = por %p200, %p201
      %p204 = scmp.ne.s32.totalorder %s189, %s203
      %p205 = scmp.eq.s32.totalorder %s26, 0
      %p206 = por %p204, %p205
      %s207 = ssub.s32 %s27, %s39
      %p208 = scmp.eq.s32.totalorder %s207, 0
      %s210 = sadd.s32 %s209, 1
      %s211 = scalar_select %p208, %s209, %s210
      %p214 = pneg %p208
      %p215 = scmp.eq.s32.totalorder %s20, 1
      %p216 = por %p214, %p215
      %p217 = scmp.ne.s32.totalorder %s209, %s212
      %p218 = scmp.eq.s32.totalorder %s20, 0
      %p219 = por %p217, %p218
      %p220 = scmp.ne.s32.totalorder %s209, %s212
      %p221 = scmp.eq.s32.totalorder %s25, 1
      %p222 = por %p220, %p221
      %p223 = scmp.ne.s32.totalorder %s212, %s213
      %p224 = scmp.eq.s32.totalorder %s25, 0
      %p225 = por %p223, %p224
      %p226 = scmp.ne.s32.totalorder %s212, %s213
      %p227 = scmp.eq.s32.totalorder %s26, 1
      %p228 = por %p226, %p227
      %p230 = scmp.ne.s32.totalorder %s213, %s229
      %p231 = scmp.eq.s32.totalorder %s26, 0
      %p232 = por %p230, %p231
      %p233 = scmp.le.s32.totalorder 1, %s20
      %p234 = scmp.lt.s32.totalorder %s20, 3
      %p235 = pnand %p233, %p234
      %p236 = pneg %p235
      // Predicated region
      $region9: #{feedforward_pallas.1} parent=5 // pred_check
        _
      $region10: #{feedforward_pallas.1} parent=5 // pred_check_branch
        %238 = sbr.rel (%p235) target = $region12
      $region11: #{feedforward_pallas.1} parent=5 // pred_region
        %s239 = ssub.s32 %s20, 1
        // Predicated region
        $region13: #{feedforward_pallas.1} parent=11 // pred_check
          %p240 = pneg %p79
        $region14: #{feedforward_pallas.1} parent=11 // pred_check_branch
          %242 = sbr.rel (%p240) target = $region16
        $region15: #{feedforward_pallas.1} parent=11 // pred_region
          _
        $region16: #{feedforward_pallas.1} parent=11 // pred_fallthru
          _
        // Predicated region
        $region17: #{feedforward_pallas.1} parent=11 // pred_check
          %p243 = pneg %p100
        $region18: #{feedforward_pallas.1} parent=11 // pred_check_branch
          %245 = sbr.rel (%p243) target = $region20
        $region19: #{feedforward_pallas.1} parent=11 // pred_region
          _
        $region20: #{feedforward_pallas.1} parent=11 // pred_fallthru
          _
        // Predicated region
        $region21: #{feedforward_pallas.1} parent=11 // pred_check
          %p246 = pneg %p126
        $region22: #{feedforward_pallas.1} parent=11 // pred_check_branch
          %248 = sbr.rel (%p246) target = $region24
        $region23: #{feedforward_pallas.1} parent=11 // pred_region
          %s249 = smul.u32 2, %s30
          %s251 = ssub.s32 2048, 2048
          %252 = vsyncadd [#allocation8], %s251
          %s253 = smul.addr %s249, 64
          %s254 = scalar_lea.hbm %s3, %s253
          %s255 = sshll.u32 [#allocation7], 4
          %s256 = int_to_ptr.vmem [resolvable:$true] %s255
          %261 = dma.hbm_to_vmem [thread:$0]  %s254, 2048, %s256, [#allocation8], 128, 128, 8
        $region24: #{feedforward_pallas.1} parent=11 // pred_fallthru
          _
        // Predicated region
        $region25: #{feedforward_pallas.1} parent=11 // pred_check
          %p262 = pneg %p152
        $region26: #{feedforward_pallas.1} parent=11 // pred_check_branch
          %264 = sbr.rel (%p262) target = $region28
        $region27: #{feedforward_pallas.1} parent=11 // pred_region
          %s265 = smul.u32 2, %s30
          %p266 = scmp.lt.s32.totalorder %s265, 1
          %s267 = scalar_select %p266, %s265, 1
          %s268 = scalar_lea.vmem %s4, %s267
          %s269 = smul.u32 2, %s30
        $region28: #{feedforward_pallas.1} parent=11 // pred_fallthru
          _
        // Predicated region
        $region29: #{feedforward_pallas.1} parent=11 // pred_check
          %p270 = pneg %p178
        $region30: #{feedforward_pallas.1} parent=11 // pred_check_branch
          %272 = sbr.rel (%p270) target = $region32
        $region31: #{feedforward_pallas.1} parent=11 // pred_region
          %s273 = smul.u32 32, %s30
          %s275 = ssub.s32 2048, 2048
          %276 = vsyncadd [#allocation8], %s275
          %s277 = smul.addr %s273, 64
          %s278 = scalar_lea.hbm %s5, %s277
          %s279 = sshll.u32 [#allocation9], 4
          %s280 = int_to_ptr.vmem [resolvable:$true] %s279
          %285 = dma.hbm_to_vmem [thread:$0]  %s278, 2048, %s280, [#allocation8], 64, 64, 4
        $region32: #{feedforward_pallas.1} parent=11 // pred_fallthru
          _
        // Predicated region
        $region33: #{feedforward_pallas.1} parent=11 // pred_check
          %p286 = pneg %p199
        $region34: #{feedforward_pallas.1} parent=11 // pred_check_branch
          %288 = sbr.rel (%p286) target = $region36
        $region35: #{feedforward_pallas.1} parent=11 // pred_region
          _
        $region36: #{feedforward_pallas.1} parent=11 // pred_fallthru
          _
      $region12: #{feedforward_pallas.1} parent=5 // pred_fallthru
        _
      %p289 = scmp.lt.s32.totalorder %s20, 2
      // Predicated region
      $region37: #{feedforward_pallas.1} parent=5 // pred_check
        %p290 = pneg %p289
      $region38: #{feedforward_pallas.1} parent=5 // pred_check_branch
        %292 = sbr.rel (%p290) target = $region40
      $region39: #{feedforward_pallas.1} parent=5 // pred_region
        // Predicated region
        $region41: #{feedforward_pallas.1} parent=39 // pred_check
          %p293 = pneg %p52
        $region42: #{feedforward_pallas.1} parent=39 // pred_check_branch
          %295 = sbr.rel (%p293) target = $region44
        $region43: #{feedforward_pallas.1} parent=39 // pred_region
          %s296 = sand.u32 %s42, 1
          %s297 = scalar_lea.sflag [#allocation5], %s296
          %s298 = sand.u32 %s42, 1
          %s299 = smul.addr %s298, 8
          %s300 = scalar_lea.vmem [#allocation4], %s299
          %s302 = ssub.s32 128, 128
          %303 = vsyncadd %s297, %s302
          %s304 = smul.addr %s27, 128
          %s305 = scalar_lea.hbm %s0, %s304
          %s307 = sshll.u32 %s300, 4
          %s308 = int_to_ptr.vmem [resolvable:$true] %s307
          %310 = dma.hbm_to_vmem [thread:$0]  %s305, 128, %s308, %s297
        $region44: #{feedforward_pallas.1} parent=39 // pred_fallthru
          _
      $region40: #{feedforward_pallas.1} parent=5 // pred_fallthru
        _
      %p311 = scmp.le.s32.totalorder 1, %s20
      %p312 = scmp.lt.s32.totalorder %s20, 3
      %p313 = pnand %p311, %p312
      %p314 = pneg %p313
      // Predicated region
      $region45: #{feedforward_pallas.1} parent=5 // pred_check
        _
      $region46: #{feedforward_pallas.1} parent=5 // pred_check_branch
        %316 = sbr.rel (%p313) target = $region48
      $region47: #{feedforward_pallas.1} parent=5 // pred_region
        %s317 = ssub.s32 %s20, 1
        %s318 = sand.u32 %s45, 1
        %s319 = scalar_lea.sflag [#allocation5], %s318
        %s320 = sand.u32 %s45, 1
        %s321 = smul.addr %s320, 8
        %s322 = scalar_lea.vmem [#allocation4], %s321
        // Predicated region
        $region49: #{feedforward_pallas.1} parent=47 // pred_check
          %p323 = pneg %p58
        $region50: #{feedforward_pallas.1} parent=47 // pred_check_branch
          %325 = sbr.rel (%p323) target = $region52
        $region51: #{feedforward_pallas.1} parent=47 // pred_region
          %326 = dma.done %s319, 128
        $region52: #{feedforward_pallas.1} parent=47 // pred_fallthru
          _
        // Predicated region
        $region53: #{feedforward_pallas.1} parent=47 // pred_check
          %p327 = pneg %p126
        $region54: #{feedforward_pallas.1} parent=47 // pred_check_branch
          %329 = sbr.rel (%p327) target = $region56
        $region55: #{feedforward_pallas.1} parent=47 // pred_region
          %330 = dma.done [#allocation8], 2048
        $region56: #{feedforward_pallas.1} parent=47 // pred_fallthru
          _
        // Predicated region
        $region57: #{feedforward_pallas.1} parent=47 // pred_check
          %p331 = pneg %p178
        $region58: #{feedforward_pallas.1} parent=47 // pred_check_branch
          %333 = sbr.rel (%p331) target = $region60
        $region59: #{feedforward_pallas.1} parent=47 // pred_region
          %334 = dma.done [#allocation8], 2048
        $region60: #{feedforward_pallas.1} parent=47 // pred_fallthru
          _
        %s335 = sand.u32 %s45, 1
        %s336 = scalar_lea.sflag [#allocation5], %s335
        %s337 = sand.u32 %s45, 1
        %s338 = smul.addr %s337, 8
        %s339 = scalar_lea.vmem [#allocation4], %s338
        %p340 = pneg %p58
        %p341 = pneg %p55
        %p342 = pneg %p79
        %p343 = pneg %p76
        %p344 = pneg %p100
        %p345 = pneg %p97
        %p346 = pneg %p126
        %p347 = pneg %p123
        %s348 = smul.u32 2, %s30
        %p349 = scmp.lt.s32.totalorder %s348, 1
        %s350 = scalar_select %p349, %s348, 1
        %s351 = scalar_lea.vmem %s4, %s350
        %p352 = pneg %p152
        %p353 = pneg %p149
        %p354 = pneg %p178
        %p355 = pneg %p175
        %p356 = pneg %p199
        %p357 = pneg %p196
        %p358 = pneg %p225
        %p359 = pneg %p222
        %s360 = sand.u32 %s212, 1
        %s361 = scalar_lea.sflag [#allocation6], %s360
        %s362 = sand.u32 %s212, 1
        %s363 = smul.addr %s362, 8
        %s364 = scalar_lea.vmem [#allocation10], %s363
        %s365 = smul.u32 2, %s30
        %s366 = smul.u32 2, %s30
        %p367 = scmp.lt.s32.totalorder %s366, 1
        %s368 = scalar_select %p367, %s366, 1
        %s369 = scalar_lea.vmem %s4, %s368
        %s370 = smul.u32 2, %s30
        %s371 = smul.u32 32, %s30
        %p373 = scmp.eq.s32.totalorder %s30, 0
        // Predicated region
        $region61: #{feedforward_pallas.1} parent=47 // pred_check
          %p374 = pneg %p373
        $region62: #{feedforward_pallas.1} parent=47 // pred_check_branch
          %376 = sbr.rel (%p374) target = $region64
        $region63: #{feedforward_pallas.1} parent=47 // pred_region
          %v377 = vld [vmem:[%s322] sm:$0xff]
          %v378 = vld [vmem:[%s1] sm:$0x1]
          %v379 = vld [vmem:[%s2] sm:$0x1]
          %380 = vadd.xlane.f32.xlu0 %v377
          %v381 = vpop.xlane.xlu0 %380
          %v382 = vrcp.pop 128.0
          %v383 = vmul.f32 %v381, %v382
          %v384 = vmul.f32 %v377, %v377
          %385 = vadd.xlane.f32.xlu0 %v384
          %v386 = vpop.xlane.xlu0 %385
          %v387 = vmul.f32 %v386, %v382
          %v388 = vmul.f32 %v383, %v383
          %v389 = vsub.f32 %v387, %v388
          %v390 = vmax.f32 %v389, 0.0
          %v391 = vadd.f32 %v390, 1e-05
          %v392 = vrsqrt.pop %v391
          %v394 = vlaneseq
          %v395 = vshrl.u32 %v394, 7
          %v396 = vsub.s32 0, %v395
          %v397 = vrot.slane %v378, %v396
          %v399 = vmul.f32 %v392, %v397
          %v400 = vsub.f32 %v377, %v383
          %v401 = vmul.f32 %v400, %v399
          %v403 = vlaneseq
          %v404 = vshrl.u32 %v403, 7
          %v405 = vsub.s32 0, %v404
          %v406 = vrot.slane %v379, %v405
          %v408 = vadd.f32 %v401, %v406
          %v409 = vpack.c.bf16 %v408, %v408
          %410 = vst [vmem:[#allocation2] sm:$0xf] %v409
          %411 = vst [vmem:[#allocation3] sm:$0xff] 0.0
        $region64: #{feedforward_pallas.1} parent=47 // pred_fallthru
          _
        %v412 = vld [vmem:[#allocation2] sm:$0xf]
        %v413 = vld [vmem:[#allocation7] sm:$0xff]
        %v414 = vld [vmem:[#allocation7 + $0x8] sm:$0xff]
        %v415 = vld [vmem:[#allocation7 + $0x10] sm:$0xff]
        %v416 = vld [vmem:[#allocation7 + $0x18] sm:$0xff]
        %v417 = vld [vmem:[#allocation7 + $0x20] sm:$0xff]
        %v418 = vld [vmem:[#allocation7 + $0x28] sm:$0xff]
        %v419 = vld [vmem:[#allocation7 + $0x30] sm:$0xff]
        %v420 = vld [vmem:[#allocation7 + $0x38] sm:$0xff]
        %v421 = vld [vmem:[#allocation7 + $0x40] sm:$0xff]
        %v422 = vld [vmem:[#allocation7 + $0x48] sm:$0xff]
        %v423 = vld [vmem:[#allocation7 + $0x50] sm:$0xff]
        %v424 = vld [vmem:[#allocation7 + $0x58] sm:$0xff]
        %v425 = vld [vmem:[#allocation7 + $0x60] sm:$0xff]
        %v426 = vld [vmem:[#allocation7 + $0x68] sm:$0xff]
        %v427 = vld [vmem:[#allocation7 + $0x70] sm:$0xff]
        %v428 = vld [vmem:[#allocation7 + $0x78] sm:$0xff]
        %v429 = vld [vmem:[%s369] sm:$0x3]
        %v431 = vlaneseq
        %v432 = vshrl.u32 %v431, 7
        %v433 = vsub.s32 0, %v432
        %v434 = vrot.slane %v429, %v433
        %v435 = vlaneseq
        %v436 = vshrl.u32 %v435, 7
        %v437 = vsub.s32 1, %v436
        %v438 = vrot.slane %v429, %v437
        %v457 = vunpack.c.l.b16 %v413
        %v458 = vunpack.c.h.b16 %v413
        %v459 = vunpack.c.l.b16 %v414
        %v460 = vunpack.c.h.b16 %v414
        %v461 = vunpack.c.l.b16 %v415
        %v462 = vunpack.c.h.b16 %v415
        %v463 = vunpack.c.l.b16 %v416
        %v464 = vunpack.c.h.b16 %v416
        %v465 = vunpack.c.l.b16 %v417
        %v466 = vunpack.c.h.b16 %v417
        %v467 = vunpack.c.l.b16 %v418
        %v468 = vunpack.c.h.b16 %v418
        %v469 = vunpack.c.l.b16 %v419
        %v470 = vunpack.c.h.b16 %v419
        %v471 = vunpack.c.l.b16 %v420
        %v472 = vunpack.c.h.b16 %v420
        %v473 = vunpack.c.l.b16 %v421
        %v474 = vunpack.c.h.b16 %v421
        %v475 = vunpack.c.l.b16 %v422
        %v476 = vunpack.c.h.b16 %v422
        %v477 = vunpack.c.l.b16 %v423
        %v478 = vunpack.c.h.b16 %v423
        %v479 = vunpack.c.l.b16 %v424
        %v480 = vunpack.c.h.b16 %v424
        %v481 = vunpack.c.l.b16 %v425
        %v482 = vunpack.c.h.b16 %v425
        %v483 = vunpack.c.l.b16 %v426
        %v484 = vunpack.c.h.b16 %v426
        %v485 = vunpack.c.l.b16 %v427
        %v486 = vunpack.c.h.b16 %v427
        %v487 = vunpack.c.l.b16 %v428
        %v488 = vunpack.c.h.b16 %v428
        %v489 = vpack.c.b16 %v459, %v457
        %v490 = vpack.c.b16 %v460, %v458
        %v491 = vpack.c.b16 %v463, %v461
        %v492 = vpack.c.b16 %v464, %v462
        %v493 = vpack.c.b16 %v467, %v465
        %v494 = vpack.c.b16 %v468, %v466
        %v495 = vpack.c.b16 %v471, %v469
        %v496 = vpack.c.b16 %v472, %v470
        %v497 = vpack.c.b16 %v475, %v473
        %v498 = vpack.c.b16 %v476, %v474
        %v499 = vpack.c.b16 %v479, %v477
        %v500 = vpack.c.b16 %v480, %v478
        %v501 = vpack.c.b16 %v483, %v481
        %v502 = vpack.c.b16 %v484, %v482
        %v503 = vpack.c.b16 %v487, %v485
        %v504 = vpack.c.b16 %v488, %v486
        %521 = vmatprep.subr.bf16.mxu0 %v504
        %522 = vmatpush1.bf16.msra.mxu0 %v503
        %523 = vmatprep.subr.bf16.mxu0 %v502
        %524 = vmatpush1.bf16.msra.mxu0 %v501
        %525 = vmatprep.subr.bf16.mxu0 %v500
        %526 = vmatpush1.bf16.msra.mxu0 %v499
        %527 = vmatprep.subr.bf16.mxu0 %v498
        %528 = vmatpush1.bf16.msra.mxu0 %v497
        %529 = vmatprep.subr.bf16.mxu0 %v496
        %530 = vmatpush1.bf16.msra.mxu0 %v495
        %531 = vmatprep.subr.bf16.mxu0 %v494
        %532 = vmatpush1.bf16.msra.mxu0 %v493
        %533 = vmatprep.subr.bf16.mxu0 %v492
        %534 = vmatpush1.bf16.msra.mxu0 %v491
        %535 = vmatprep.subr.bf16.mxu0 %v490
        %536 = vmatpush1.bf16.msra.mxu0 %v489
        %537 = vmatprep.subr.bf16.mxu0 0
        %538 = vmatpush2.bf16.msra.mxu0 0
        %539 = vmatprep.subr.bf16.mxu0 0
        %540 = vmatpush2.bf16.msra.mxu0 0
        %541 = vmatprep.subr.bf16.mxu0 0
        %542 = vmatpush2.bf16.msra.mxu0 0
        %543 = vmatprep.subr.bf16.mxu0 0
        %544 = vmatpush2.bf16.msra.mxu0 0
        %545 = vmatprep.subr.bf16.mxu0 0
        %546 = vmatpush2.bf16.msra.mxu0 0
        %547 = vmatprep.subr.bf16.mxu0 0
        %548 = vmatpush2.bf16.msra.mxu0 0
        %549 = vmatprep.subr.bf16.mxu0 0
        %550 = vmatpush2.bf16.msra.mxu0 0
        %551 = vmatprep.subr.bf16.mxu0 0
        %552 = vmatpush2.bf16.msra.mxu0 0
        %553 = vmatprep.mubr.bf16.mxu0 0
        %554 = vmatmul.mubr.bf16.gmra.mxu0 %v412
        %v555 = vpop.f32.mrf.mxu0
        %v556 = vadd.f32 %v434, %v555
        %v557 = vpop.f32.mrf.mxu0
        %v558 = vadd.f32 %v438, %v557
        %v559 = vpop.f32.mrf.mxu0
        %v560 = vpop.f32.mrf.mxu0
        %561 = vdwg.mxu0
        %v562 = vmul.f32 %v556, 0.5
        %v563 = vmul.f32 %v558, 0.5
        %v564 = vmul.f32 %v556, 0.70710677
        %v565 = vmul.f32 %v558, 0.70710677
        %v566 = verf.f32.pop %v564
        %v567 = verf.f32.pop %v565
        %v568 = vadd.f32 %v566, 1.0
        %v569 = vadd.f32 %v567, 1.0
        %v570 = vmul.f32 %v562, %v568
        %v571 = vmul.f32 %v563, %v569
        %v572 = vld [vmem:[#allocation3] sm:$0xff]
        %v573 = vpack.c.bf16 %v570, %v570
        %v574 = vpack.c.bf16 %v571, %v571
        %v575 = vld [vmem:[#allocation9] sm:$0xf]
        %v576 = vld [vmem:[#allocation9 + $0x4] sm:$0xf]
        %v577 = vld [vmem:[#allocation9 + $0x8] sm:$0xf]
        %v578 = vld [vmem:[#allocation9 + $0xc] sm:$0xf]
        %v579 = vld [vmem:[#allocation9 + $0x10] sm:$0xf]
        %v580 = vld [vmem:[#allocation9 + $0x14] sm:$0xf]
        %v581 = vld [vmem:[#allocation9 + $0x18] sm:$0xf]
        %v582 = vld [vmem:[#allocation9 + $0x1c] sm:$0xf]
        %v583 = vld [vmem:[#allocation9 + $0x20] sm:$0xf]
        %v584 = vld [vmem:[#allocation9 + $0x24] sm:$0xf]
        %v585 = vld [vmem:[#allocation9 + $0x28] sm:$0xf]
        %v586 = vld [vmem:[#allocation9 + $0x2c] sm:$0xf]
        %v587 = vld [vmem:[#allocation9 + $0x30] sm:$0xf]
        %v588 = vld [vmem:[#allocation9 + $0x34] sm:$0xf]
        %v589 = vld [vmem:[#allocation9 + $0x38] sm:$0xf]
        %v590 = vld [vmem:[#allocation9 + $0x3c] sm:$0xf]
        %v591 = vld [vmem:[#allocation9 + $0x40] sm:$0xf]
        %v592 = vld [vmem:[#allocation9 + $0x44] sm:$0xf]
        %v593 = vld [vmem:[#allocation9 + $0x48] sm:$0xf]
        %v594 = vld [vmem:[#allocation9 + $0x4c] sm:$0xf]
        %v595 = vld [vmem:[#allocation9 + $0x50] sm:$0xf]
        %v596 = vld [vmem:[#allocation9 + $0x54] sm:$0xf]
        %v597 = vld [vmem:[#allocation9 + $0x58] sm:$0xf]
        %v598 = vld [vmem:[#allocation9 + $0x5c] sm:$0xf]
        %v599 = vld [vmem:[#allocation9 + $0x60] sm:$0xf]
        %v600 = vld [vmem:[#allocation9 + $0x64] sm:$0xf]
        %v601 = vld [vmem:[#allocation9 + $0x68] sm:$0xf]
        %v602 = vld [vmem:[#allocation9 + $0x6c] sm:$0xf]
        %v603 = vld [vmem:[#allocation9 + $0x70] sm:$0xf]
        %v604 = vld [vmem:[#allocation9 + $0x74] sm:$0xf]
        %v605 = vld [vmem:[#allocation9 + $0x78] sm:$0xf]
        %v606 = vld [vmem:[#allocation9 + $0x7c] sm:$0xf]
        %v639 = vunpack.c.l.b16 %v575
        %v640 = vunpack.c.l.b16 %v576
        %v641 = vunpack.c.l.b16 %v577
        %v642 = vunpack.c.l.b16 %v578
        %v643 = vunpack.c.l.b16 %v579
        %v644 = vunpack.c.l.b16 %v580
        %v645 = vunpack.c.l.b16 %v581
        %v646 = vunpack.c.l.b16 %v582
        %v647 = vunpack.c.l.b16 %v583
        %v648 = vunpack.c.l.b16 %v584
        %v649 = vunpack.c.l.b16 %v585
        %v650 = vunpack.c.l.b16 %v586
        %v651 = vunpack.c.l.b16 %v587
        %v652 = vunpack.c.l.b16 %v588
        %v653 = vunpack.c.l.b16 %v589
        %v654 = vunpack.c.l.b16 %v590
        %v655 = vunpack.c.l.b16 %v591
        %v656 = vunpack.c.l.b16 %v592
        %v657 = vunpack.c.l.b16 %v593
        %v658 = vunpack.c.l.b16 %v594
        %v659 = vunpack.c.l.b16 %v595
        %v660 = vunpack.c.l.b16 %v596
        %v661 = vunpack.c.l.b16 %v597
        %v662 = vunpack.c.l.b16 %v598
        %v663 = vunpack.c.l.b16 %v599
        %v664 = vunpack.c.l.b16 %v600
        %v665 = vunpack.c.l.b16 %v601
        %v666 = vunpack.c.l.b16 %v602
        %v667 = vunpack.c.l.b16 %v603
        %v668 = vunpack.c.l.b16 %v604
        %v669 = vunpack.c.l.b16 %v605
        %v670 = vunpack.c.l.b16 %v606
        %v671 = vpack.c.b16 %v640, %v639
        %v672 = vpack.c.b16 %v642, %v641
        %v673 = vpack.c.b16 %v644, %v643
        %v674 = vpack.c.b16 %v646, %v645
        %v675 = vpack.c.b16 %v648, %v647
        %v676 = vpack.c.b16 %v650, %v649
        %v677 = vpack.c.b16 %v652, %v651
        %v678 = vpack.c.b16 %v654, %v653
        %v679 = vpack.c.b16 %v656, %v655
        %v680 = vpack.c.b16 %v658, %v657
        %v681 = vpack.c.b16 %v660, %v659
        %v682 = vpack.c.b16 %v662, %v661
        %v683 = vpack.c.b16 %v664, %v663
        %v684 = vpack.c.b16 %v666, %v665
        %v685 = vpack.c.b16 %v668, %v667
        %v686 = vpack.c.b16 %v670, %v669
        %703 = vmatprep.subr.bf16.mxu0 0
        %704 = vmatpush1.bf16.msra.mxu0 %v678
        %705 = vmatprep.subr.bf16.mxu0 0
        %706 = vmatpush1.bf16.msra.mxu0 %v677
        %707 = vmatprep.subr.bf16.mxu0 0
        %708 = vmatpush1.bf16.msra.mxu0 %v676
        %709 = vmatprep.subr.bf16.mxu0 0
        %710 = vmatpush1.bf16.msra.mxu0 %v675
        %711 = vmatprep.subr.bf16.mxu0 0
        %712 = vmatpush1.bf16.msra.mxu0 %v674
        %713 = vmatprep.subr.bf16.mxu0 0
        %714 = vmatpush1.bf16.msra.mxu0 %v673
        %715 = vmatprep.subr.bf16.mxu0 0
        %716 = vmatpush1.bf16.msra.mxu0 %v672
        %717 = vmatprep.subr.bf16.mxu0 0
        %718 = vmatpush1.bf16.msra.mxu0 %v671
        %719 = vmatprep.subr.bf16.mxu0 0
        %720 = vmatpush2.bf16.msra.mxu0 %v686
        %721 = vmatprep.subr.bf16.mxu0 0
        %722 = vmatpush2.bf16.msra.mxu0 %v685
        %723 = vmatprep.subr.bf16.mxu0 0
        %724 = vmatpush2.bf16.msra.mxu0 %v684
        %725 = vmatprep.subr.bf16.mxu0 0
        %726 = vmatpush2.bf16.msra.mxu0 %v683
        %727 = vmatprep.subr.bf16.mxu0 0
        %728 = vmatpush2.bf16.msra.mxu0 %v682
        %729 = vmatprep.subr.bf16.mxu0 0
        %730 = vmatpush2.bf16.msra.mxu0 %v681
        %731 = vmatprep.subr.bf16.mxu0 0
        %732 = vmatpush2.bf16.msra.mxu0 %v680
        %733 = vmatprep.subr.bf16.mxu0 0
        %734 = vmatpush2.bf16.msra.mxu0 %v679
        %735 = vmatprep.mubr.bf16.mxu0 %v574
        %736 = vmatmul.mubr.bf16.gmra.mxu0 %v573
        %v737 = vpop.f32.mrf.mxu0
        %v738 = vadd.f32 0.0, %v737
        %v739 = vpop.f32.mrf.mxu0
        %v740 = vpop.f32.mrf.mxu0
        %v741 = vpop.f32.mrf.mxu0
        %742 = vdwg.mxu0
        %v743 = vadd.f32 %v572, %v738
        %744 = vst [vmem:[#allocation3] sm:$0xff] %v743
        // Predicated region
        $region65: #{feedforward_pallas.1} parent=47 // pred_check
          %p745 = pneg %p373
        $region66: #{feedforward_pallas.1} parent=47 // pred_check_branch
          %747 = sbr.rel (%p745) target = $region68
        $region67: #{feedforward_pallas.1} parent=47 // pred_region
          %v748 = vld [vmem:[#allocation3] sm:$0xff]
          %v749 = vld [vmem:[%s6] sm:$0x1]
          %v751 = vlaneseq
          %v752 = vshrl.u32 %v751, 7
          %v753 = vsub.s32 0, %v752
          %v754 = vrot.slane %v749, %v753
          %v756 = vadd.f32 %v748, %v754
          %757 = vst [vmem:[%s364] sm:$0xff] %v756
        $region68: #{feedforward_pallas.1} parent=47 // pred_fallthru
          _
        %s758 = sand.u32 %s212, 1
        %s759 = scalar_lea.sflag [#allocation6], %s758
        %s760 = sand.u32 %s212, 1
        %s761 = smul.addr %s760, 8
        %s762 = scalar_lea.vmem [#allocation10], %s761
        // Predicated region
        $region69: #{feedforward_pallas.1} parent=47 // pred_check
          %p763 = pneg %p222
        $region70: #{feedforward_pallas.1} parent=47 // pred_check_branch
          %765 = sbr.rel (%p763) target = $region72
        $region71: #{feedforward_pallas.1} parent=47 // pred_region
          %s767 = ssub.s32 128, 128
          %768 = vsyncadd %s759, %s767
          %s769 = smul.addr %s29, 128
          %s770 = scalar_lea.hbm %s7, %s769
          %s772 = sshll.u32 %s762, 4
          %s773 = int_to_ptr.vmem [resolvable:$true] %s772
          %775 = dma.vmem_to_hbm [thread:$0]  %s773, 128, %s770, %s759
        $region72: #{feedforward_pallas.1} parent=47 // pred_fallthru
          _
      $region48: #{feedforward_pallas.1} parent=5 // pred_fallthru
        _
      %p776 = scmp.le.s32.totalorder 2, %s20
      // Predicated region
      $region73: #{feedforward_pallas.1} parent=5 // pred_check
        %p777 = pneg %p776
      $region74: #{feedforward_pallas.1} parent=5 // pred_check_branch
        %779 = sbr.rel (%p777) target = $region76
      $region75: #{feedforward_pallas.1} parent=5 // pred_region
        %s780 = ssub.s32 %s20, 2
        // Predicated region
        $region77: #{feedforward_pallas.1} parent=75 // pred_check
          %p781 = pneg %p228
        $region78: #{feedforward_pallas.1} parent=75 // pred_check_branch
          %783 = sbr.rel (%p781) target = $region80
        $region79: #{feedforward_pallas.1} parent=75 // pred_region
          %s784 = sand.u32 %s213, 1
          %s785 = scalar_lea.sflag [#allocation6], %s784
          %s786 = sand.u32 %s213, 1
          %s787 = smul.addr %s786, 8
          %s788 = scalar_lea.vmem [#allocation10], %s787
          %789 = dma.done %s785, 128
        $region80: #{feedforward_pallas.1} parent=75 // pred_fallthru
          _
      $region76: #{feedforward_pallas.1} parent=5 // pred_fallthru
        _
    $region6: #{feedforward_pallas.1} parent=1 // loop_footer
      %s24 = sadd.s32 1, %s20
    $region7: #{feedforward_pallas.1} parent=1 // loop_footer_branch
      %19 = sbr.rel target = $region3
    $region8: #{feedforward_pallas.1} parent=1 // loop_exit
      _
    %790 = vsyncpa [#allocation5], 1
    %s791 = scalar_lea.sflag [#allocation5], 1
    %792 = vsyncpa %s791, 1
    %793 = vsyncpa [#allocation8], 1
    %794 = vsyncpa [#allocation6], 1
    %s795 = scalar_lea.sflag [#allocation6], 1
    %796 = vsyncpa %s795, 1

</llo_original>
